<compile_context>
chip_gen: v7x
topology: tpu7x:2x2x1
jax: 0.10.0
libtpu: 0.0.40
codegen_flags: <defaults>
</compile_context>

<pallas_src>
import functools

import jax
import jax.numpy as jnp
from jax.experimental import pallas as pl
from jax.experimental.pallas import tpu as pltpu


def _actor_kernel(num_layers, x_ref, *refs):
    """Fused MLP, transposed dataflow: activations are (features, batch_tile).

    refs = (w0, b0, w1, b1, ..., wL, bL, out).
    Weights are PyTorch-native (out_dim, in_dim); biases are (out_dim, 1);
    the output tile is (action_dim, tb) — lane-dense by construction.
    """
    o_ref = refs[-1]
    params = refs[:-1]

    h = x_ref[...]                                          # (in_dim, tb)
    for li in range(num_layers):
        w = params[2 * li][...]                             # (out_dim, in_dim)
        b = params[2 * li + 1][...].astype(jnp.float32)     # (out_dim, 1)
        rhs = h if h.dtype == w.dtype else h.astype(w.dtype)
        h = jnp.dot(w, rhs, preferred_element_type=jnp.float32) + b
        if li < num_layers - 1:
            h = jnp.maximum(h, 0.0)                         # ReLU on the VPU
        else:
            h = jnp.tanh(h)                                 # Tanh on the EUP
    o_ref[...] = h.astype(o_ref.dtype)                      # (action_dim, tb)


def _default_block_batch(B, max_dim):
    """One block for the whole batch unless the live tiles would blow VMEM.

    Grid steps are pure overhead on single-TC chips (v5e/v6e) and this kernel
    is per-step-overhead bound, so step count is minimized.  If tiling is
    needed, use lane-aligned multiples of 256 (full MXU width on v6e/v7x,
    2x128 on v5e)."""
    per_row = max_dim * 4 * 8          # generous bound on live bytes per batch row
    budget = 16 << 20                  # conservative tile budget (fits every gen)
    if B * per_row <= budget:
        return B
    tb = (budget // per_row) // 256 * 256
    return max(int(tb), 256)


def actor_forward(state, weights, biases, *, block_batch=None, use_bf16=True):
    """Run the Actor MLP forward with a single fused pallas_call.

    state:   (B, state_dim) float32
    weights: list of (out_dim, in_dim) float32 (PyTorch-native layout)
    biases:  list of (out_dim,) float32
    Returns (B, action_dim) float32.
    """
    B, state_dim = state.shape
    num_layers = len(weights)
    action_dim = weights[-1].shape[0]
    dims = [state_dim] + [w.shape[0] for w in weights]

    # Transposed dataflow: batch on the 128-lane axis; cast once in the
    # wrapper so the kernel never round-trips the input through f32.
    x = state.T                                              # (state_dim, B)
    if use_bf16:
        x = x.astype(jnp.bfloat16)
        weights_in = [w.astype(jnp.bfloat16) for w in weights]
    else:
        weights_in = list(weights)
    biases_in = [b.reshape(-1, 1).astype(jnp.float32) for b in biases]

    tb = _default_block_batch(B, max(dims)) if block_batch is None else block_batch
    grid = (pl.cdiv(B, tb),)

    flat_params = []
    for w, b in zip(weights_in, biases_in):
        flat_params.extend([w, b])

    in_specs = [pl.BlockSpec((state_dim, tb), lambda i: (0, i))]
    for w, b in zip(weights_in, biases_in):
        in_specs.append(pl.BlockSpec(w.shape, lambda i: (0, 0)))
        in_specs.append(pl.BlockSpec(b.shape, lambda i: (0, 0)))
    out_spec = pl.BlockSpec((action_dim, tb), lambda i: (0, i))
    out_shape = jax.ShapeDtypeStruct((action_dim, B), jnp.float32)

    # Advisory cost estimate so XLA can overlap this tiny kernel.
    flops = 2 * B * sum(dims[i] * dims[i + 1] for i in range(num_layers))
    param_bytes = sum(int(p.size) * p.dtype.itemsize for p in flat_params)
    bytes_accessed = (
        param_bytes
        + int(x.size) * x.dtype.itemsize
        + B * action_dim * 4
    )
    cost = pl.CostEstimate(
        flops=flops, transcendentals=B * action_dim, bytes_accessed=bytes_accessed
    )

    # Tight VMEM budget: double-buffered params + I/O tiles + live activations
    # + headroom.  No 32 MiB floor — this kernel only needs a few MiB and on
    # v7x VMEM (64 MiB) is shared with neighbouring fusions.
    est = (
        2 * param_bytes
        + 2 * state_dim * tb * x.dtype.itemsize
        + 2 * action_dim * tb * 4
        + 8 * tb * max(dims) * 4
        + (4 << 20)
    )
    vmem_limit = int(min(est, 64 << 20))

    kernel = functools.partial(_actor_kernel, num_layers)
    out_t = pl.pallas_call(
        kernel,
        out_shape=out_shape,
        grid_spec=pltpu.PrefetchScalarGridSpec(
            num_scalar_prefetch=0,
            grid=grid,
            in_specs=in_specs,
            out_specs=out_spec,
        ),
        compiler_params=pltpu.CompilerParams(
            dimension_semantics=("parallel",),
            vmem_limit_bytes=vmem_limit,
        ),
        cost_estimate=cost,
    )(x, *flat_params)
    return out_t.T                                           # (B, action_dim)


def init_actor_params(key, state_dim, action_dim, hidden_layers):
    """Deterministic init mimicking nn.Linear's U(-1/sqrt(in), 1/sqrt(in)).

    Weights are stored PyTorch-native (out_dim, in_dim)."""
    dims = [state_dim] + list(hidden_layers) + [action_dim]
    weights, biases = [], []
    for i in range(len(dims) - 1):
        key, kw, kb = jax.random.split(key, 3)
        bound = 1.0 / jnp.sqrt(dims[i])
        w = jax.random.uniform(
            kw, (dims[i + 1], dims[i]), jnp.float32, minval=-bound, maxval=bound
        )
        b = jax.random.uniform(
            kb, (dims[i + 1],), jnp.float32, minval=-bound, maxval=bound
        )
        weights.append(w)
        biases.append(b)
    return weights, biases


def actor_reference(state, weights, biases, *, use_bf16=True):
    """Pure-JAX reference (PyTorch semantics: y = x @ W.T + b).

    With use_bf16=True it mirrors the kernel's bf16 MXU operands / f32
    accumulation so the comparison is apples-to-apples."""
    h = state.astype(jnp.float32)
    n = len(weights)
    for li, (w, b) in enumerate(zip(weights, biases)):
        if use_bf16:
            p = jnp.dot(
                h.astype(jnp.bfloat16),
                w.T.astype(jnp.bfloat16),
                preferred_element_type=jnp.float32,
            )
        else:
            p = jnp.dot(h, w.T, preferred_element_type=jnp.float32)
        h = p + b.astype(jnp.float32)
        h = jnp.maximum(h, 0.0) if li < n - 1 else jnp.tanh(h)
    return h


if __name__ == "__main__":
    state_dim, action_dim, hidden_layers = 16, 8, (32, 32)

    key = jax.random.PRNGKey(0)
    key, kx = jax.random.split(key)
    weights, biases = init_actor_params(key, state_dim, action_dim, hidden_layers)

    # Small case (single grid step, tiny lane tile).
    state_small = jax.random.normal(kx, (8, state_dim), dtype=jnp.float32)
    out_small = jax.block_until_ready(actor_forward(state_small, weights, biases))
    assert out_small.shape == (8, action_dim)
    ref_small = actor_reference(state_small, weights, biases)
    assert jnp.allclose(out_small, ref_small, atol=2e-3, rtol=2e-3), "mismatch (bf16 ref)"
    ref_small_f32 = actor_reference(state_small, weights, biases, use_bf16=False)
    assert jnp.allclose(out_small, ref_small_f32, atol=5e-2, rtol=0.0), "mismatch (f32 ref)"

    # Larger batch: whole batch in one block, batch packed along 128 lanes.
    key, kx2 = jax.random.split(key)
    state_big = jax.random.normal(kx2, (256, state_dim), dtype=jnp.float32)
    out_big = jax.block_until_ready(actor_forward(state_big, weights, biases))
    assert out_big.shape == (256, action_dim)
    ref_big = actor_reference(state_big, weights, biases)
    assert jnp.allclose(out_big, ref_big, atol=2e-3, rtol=2e-3), "mismatch (big batch)"

    print("KERNEL_OK")
</pallas_src>

<mosaic_0001>
module attributes {stable_mosaic.version = 11 : i64} {
  func.func @_actor_kernel(%arg0: i32, %arg1: memref<16x8xbf16, #tpu.memory_space<vmem>>, %arg2: memref<32x16xbf16, #tpu.memory_space<vmem>>, %arg3: memref<32x1xf32, #tpu.memory_space<vmem>>, %arg4: memref<32x32xbf16, #tpu.memory_space<vmem>>, %arg5: memref<32x1xf32, #tpu.memory_space<vmem>>, %arg6: memref<8x32xbf16, #tpu.memory_space<vmem>>, %arg7: memref<8x1xf32, #tpu.memory_space<vmem>>, %arg8: memref<8x8xf32, #tpu.memory_space<vmem>>) attributes {dimension_semantics = [#tpu.dimension_semantics<parallel>], iteration_bounds = array<i64: 1>, scalar_prefetch = 0 : i64, scratch_operands = 0 : i64, tpu.core_type = #tpu.core_type<tc>, window_params = [{transform_indices = @transform_0, window_bounds = array<i64: 16, 8>}, {pipeline_mode = #tpu.pipeline_mode<synchronous>, transform_indices = @transform_1, window_bounds = array<i64: 32, 16>}, {pipeline_mode = #tpu.pipeline_mode<synchronous>, transform_indices = @transform_2, window_bounds = array<i64: 32, 1>}, {pipeline_mode = #tpu.pipeline_mode<synchronous>, transform_indices = @transform_3, window_bounds = array<i64: 32, 32>}, {pipeline_mode = #tpu.pipeline_mode<synchronous>, transform_indices = @transform_4, window_bounds = array<i64: 32, 1>}, {pipeline_mode = #tpu.pipeline_mode<synchronous>, transform_indices = @transform_5, window_bounds = array<i64: 8, 32>}, {pipeline_mode = #tpu.pipeline_mode<synchronous>, transform_indices = @transform_6, window_bounds = array<i64: 8, 1>}, {transform_indices = @transform_7, window_bounds = array<i64: 8, 8>}]} {
    %c0 = arith.constant 0 : index
    %c0_0 = arith.constant 0 : index
    %0 = vector.load %arg1[%c0, %c0_0] : memref<16x8xbf16, #tpu.memory_space<vmem>>, vector<16x8xbf16>
    %c0_1 = arith.constant 0 : index
    %c0_2 = arith.constant 0 : index
    %1 = vector.load %arg2[%c0_1, %c0_2] : memref<32x16xbf16, #tpu.memory_space<vmem>>, vector<32x16xbf16>
    %c0_3 = arith.constant 0 : index
    %c0_4 = arith.constant 0 : index
    %2 = vector.load %arg3[%c0_3, %c0_4] : memref<32x1xf32, #tpu.memory_space<vmem>>, vector<32x1xf32>
    %cst = arith.constant dense<0.000000e+00> : vector<32x8xf32>
    %3 = tpu.matmul %1, %0, %cst {dimension_numbers = #tpu.dot_dimension_numbers<[1], [0], [0], [1], [0, 0, 1, 1], [], []>} : vector<32x16xbf16>, vector<16x8xbf16>, vector<32x8xf32> -> vector<32x8xf32>
    %4 = vector.broadcast %2 : vector<32x1xf32> to vector<32x8xf32>
    %5 = arith.addf %3, %4 : vector<32x8xf32>
    %cst_5 = arith.constant 0.000000e+00 : f32
    %6 = vector.broadcast %cst_5 : f32 to vector<32x8xf32>
    %7 = arith.maximumf %5, %6 : vector<32x8xf32>
    %c0_6 = arith.constant 0 : index
    %c0_7 = arith.constant 0 : index
    %8 = vector.load %arg4[%c0_6, %c0_7] : memref<32x32xbf16, #tpu.memory_space<vmem>>, vector<32x32xbf16>
    %c0_8 = arith.constant 0 : index
    %c0_9 = arith.constant 0 : index
    %9 = vector.load %arg5[%c0_8, %c0_9] : memref<32x1xf32, #tpu.memory_space<vmem>>, vector<32x1xf32>
    %10 = arith.truncf %7 : vector<32x8xf32> to vector<32x8xbf16>
    %cst_10 = arith.constant dense<0.000000e+00> : vector<32x8xf32>
    %11 = tpu.matmul %8, %10, %cst_10 {dimension_numbers = #tpu.dot_dimension_numbers<[1], [0], [0], [1], [0, 0, 1, 1], [], []>} : vector<32x32xbf16>, vector<32x8xbf16>, vector<32x8xf32> -> vector<32x8xf32>
    %12 = vector.broadcast %9 : vector<32x1xf32> to vector<32x8xf32>
    %13 = arith.addf %11, %12 : vector<32x8xf32>
    %cst_11 = arith.constant 0.000000e+00 : f32
    %14 = vector.broadcast %cst_11 : f32 to vector<32x8xf32>
    %15 = arith.maximumf %13, %14 : vector<32x8xf32>
    %c0_12 = arith.constant 0 : index
    %c0_13 = arith.constant 0 : index
    %16 = vector.load %arg6[%c0_12, %c0_13] : memref<8x32xbf16, #tpu.memory_space<vmem>>, vector<8x32xbf16>
    %c0_14 = arith.constant 0 : index
    %c0_15 = arith.constant 0 : index
    %17 = vector.load %arg7[%c0_14, %c0_15] : memref<8x1xf32, #tpu.memory_space<vmem>>, vector<8x1xf32>
    %18 = arith.truncf %15 : vector<32x8xf32> to vector<32x8xbf16>
    %cst_16 = arith.constant dense<0.000000e+00> : vector<8x8xf32>
    %19 = tpu.matmul %16, %18, %cst_16 {dimension_numbers = #tpu.dot_dimension_numbers<[1], [0], [0], [1], [0, 0, 1, 1], [], []>} : vector<8x32xbf16>, vector<32x8xbf16>, vector<8x8xf32> -> vector<8x8xf32>
    %20 = vector.broadcast %17 : vector<8x1xf32> to vector<8x8xf32>
    %21 = arith.addf %19, %20 : vector<8x8xf32>
    %22 = math.tanh %21 : vector<8x8xf32>
    %c0_17 = arith.constant 0 : index
    %c0_18 = arith.constant 0 : index
    %23 = vector.load %arg8[%c0_17, %c0_18] : memref<8x8xf32, #tpu.memory_space<vmem>>, vector<8x8xf32>
    tpu.vector_store %arg8[%c0_17, %c0_18], %22 {strides = array<i32>} : memref<8x8xf32, #tpu.memory_space<vmem>>, vector<8x8xf32>,
    return
  }
  func.func @transform_0(%arg0: i32) -> (i32, i32) {
    %c0_i32 = arith.constant 0 : i32
    %c0_i32_0 = arith.constant 0 : i32
    return %c0_i32, %arg0 : i32, i32
  }
  func.func @transform_1(%arg0: i32) -> (i32, i32) {
    %c0_i32 = arith.constant 0 : i32
    %c0_i32_0 = arith.constant 0 : i32
    %c0_i32_1 = arith.constant 0 : i32
    return %c0_i32, %c0_i32_0 : i32, i32
  }
  func.func @transform_2(%arg0: i32) -> (i32, i32) {
    %c0_i32 = arith.constant 0 : i32
    %c0_i32_0 = arith.constant 0 : i32
    %c0_i32_1 = arith.constant 0 : i32
    return %c0_i32, %c0_i32_0 : i32, i32
  }
  func.func @transform_3(%arg0: i32) -> (i32, i32) {
    %c0_i32 = arith.constant 0 : i32
    %c0_i32_0 = arith.constant 0 : i32
    %c0_i32_1 = arith.constant 0 : i32
    return %c0_i32, %c0_i32_0 : i32, i32
  }
  func.func @transform_4(%arg0: i32) -> (i32, i32) {
    %c0_i32 = arith.constant 0 : i32
    %c0_i32_0 = arith.constant 0 : i32
    %c0_i32_1 = arith.constant 0 : i32
    return %c0_i32, %c0_i32_0 : i32, i32
  }
  func.func @transform_5(%arg0: i32) -> (i32, i32) {
    %c0_i32 = arith.constant 0 : i32
    %c0_i32_0 = arith.constant 0 : i32
    %c0_i32_1 = arith.constant 0 : i32
    return %c0_i32, %c0_i32_0 : i32, i32
  }
  func.func @transform_6(%arg0: i32) -> (i32, i32) {
    %c0_i32 = arith.constant 0 : i32
    %c0_i32_0 = arith.constant 0 : i32
    %c0_i32_1 = arith.constant 0 : i32
    return %c0_i32, %c0_i32_0 : i32, i32
  }
  func.func @transform_7(%arg0: i32) -> (i32, i32) {
    %c0_i32 = arith.constant 0 : i32
    %c0_i32_0 = arith.constant 0 : i32
    return %c0_i32, %arg0 : i32, i32
  }
}

</mosaic_0001>

<llo_original>
// kernel: tpu_custom_call.1
$region0: #{tpu_custom_call.1}
  #allocation0 [shape = 'u32[]', space=smem, size = 0x4, offset = 0x4, fixed_abs, tag = 'smem constant byte address 0x4 - core index']
  #allocation1 [shape = 'u32[144,128]{1,0:T(1,128)}', space=vmem, size = 0x12000, scoped, tag = 'internal scratch']
  %s0 = inlined_call_operand.vmem [shape: bf16[16,8], index: 0, kind: input, shape index: {}]
  %s1 = inlined_call_operand.vmem [shape: bf16[32,16], index: 1, kind: input, shape index: {}]
  %s2 = inlined_call_operand.vmem [shape: f32[32,1], index: 2, kind: input, shape index: {}]
  %s3 = inlined_call_operand.vmem [shape: bf16[32,32], index: 3, kind: input, shape index: {}]
  %s4 = inlined_call_operand.vmem [shape: f32[32,1], index: 4, kind: input, shape index: {}]
  %s5 = inlined_call_operand.vmem [shape: bf16[8,32], index: 5, kind: input, shape index: {}]
  %s6 = inlined_call_operand.vmem [shape: f32[8,1], index: 6, kind: input, shape index: {}]
  %s7 = inlined_call_operand.hbm [shape: f32[8,8], index: 7, kind: output, shape index: {}]
  %s8 = sld [smem:[#allocation0]]
  $region38: #{tpu_custom_call.1} parent=0
    _
  %s10 = ssub.s32 1, %s8
  %s11 = scalar_select 0, %s10, %s8
  $region1: #{tpu_custom_call.1} parent=0
    #allocation2 [shape = 'u8[4096]{0}', space=vmem, size = 0x1000, scoped, tag = 'output window, operand 0, single buffered']
    #allocation3 [shape = 's32[1]{0}', space=sflag, size = 0x4, scoped, tag = 'scoped memory for tpu_custom_call.1']
    %12 = vsyncpa [#allocation3], 0
    // Predicated region
    $region2: #{tpu_custom_call.1} parent=1 // pred_check
      _
    $region3: #{tpu_custom_call.1} parent=1 // pred_check_branch
      %14 = sbr.rel (0) target = $region5
    $region4: #{tpu_custom_call.1} parent=1 // pred_region
      _
    $region5: #{tpu_custom_call.1} parent=1 // pred_fallthru
      _
    // Predicated region
    $region6: #{tpu_custom_call.1} parent=1 // pred_check
      _
    $region7: #{tpu_custom_call.1} parent=1 // pred_check_branch
      %16 = sbr.rel (0) target = $region9
    $region8: #{tpu_custom_call.1} parent=1 // pred_region
      _
    $region9: #{tpu_custom_call.1} parent=1 // pred_fallthru
      _
    // Predicated region
    $region10: #{tpu_custom_call.1} parent=1 // pred_check
      _
    $region11: #{tpu_custom_call.1} parent=1 // pred_check_branch
      %18 = sbr.rel (0) target = $region13
    $region12: #{tpu_custom_call.1} parent=1 // pred_region
      _
    $region13: #{tpu_custom_call.1} parent=1 // pred_fallthru
      _
    // Predicated region
    $region14: #{tpu_custom_call.1} parent=1 // pred_check
      _
    $region15: #{tpu_custom_call.1} parent=1 // pred_check_branch
      %20 = sbr.rel (0) target = $region17
    $region16: #{tpu_custom_call.1} parent=1 // pred_region
      _
    $region17: #{tpu_custom_call.1} parent=1 // pred_fallthru
      _
    // Predicated region
    $region18: #{tpu_custom_call.1} parent=1 // pred_check
      _
    $region19: #{tpu_custom_call.1} parent=1 // pred_check_branch
      %22 = sbr.rel (0) target = $region21
    $region20: #{tpu_custom_call.1} parent=1 // pred_region
      _
    $region21: #{tpu_custom_call.1} parent=1 // pred_fallthru
      _
    // Predicated region
    $region22: #{tpu_custom_call.1} parent=1 // pred_check
      _
    $region23: #{tpu_custom_call.1} parent=1 // pred_check_branch
      %24 = sbr.rel (0) target = $region25
    $region24: #{tpu_custom_call.1} parent=1 // pred_region
      _
    $region25: #{tpu_custom_call.1} parent=1 // pred_fallthru
      _
    // Predicated region
    $region26: #{tpu_custom_call.1} parent=1 // pred_check
      _
    $region27: #{tpu_custom_call.1} parent=1 // pred_check_branch
      %26 = sbr.rel (0) target = $region29
    $region28: #{tpu_custom_call.1} parent=1 // pred_region
      _
    $region29: #{tpu_custom_call.1} parent=1 // pred_fallthru
      _
    %v28 = vld [vmem:[%s0] sm:$0xf]
    %v29 = vld [vmem:[%s0 + $0x4] sm:$0xf]
    %v30 = vld [vmem:[%s1] sm:$0xf]
    %v31 = vld [vmem:[%s1 + $0x4] sm:$0xf]
    %v32 = vld [vmem:[%s1 + $0x8] sm:$0xf]
    %v33 = vld [vmem:[%s1 + $0xc] sm:$0xf]
    %v34 = vld [vmem:[%s2] sm:$0xff]
    %v35 = vld [vmem:[%s2 + $0x8] sm:$0xff]
    %v36 = vld [vmem:[%s2 + $0x10] sm:$0xff]
    %v37 = vld [vmem:[%s2 + $0x18] sm:$0xff]
    %39 = vset.pattern.permute.xlu0 0
    %40 = vperm.xlu0 %39, %v34
    %v41 = vpop.permute.xlu0 %40
    %44 = vset.pattern.permute.xlu0 0
    %45 = vperm.xlu0 %44, %v35
    %v46 = vpop.permute.xlu0 %45
    %49 = vset.pattern.permute.xlu0 0
    %50 = vperm.xlu0 %49, %v36
    %v51 = vpop.permute.xlu0 %50
    %54 = vset.pattern.permute.xlu0 0
    %55 = vperm.xlu0 %54, %v37
    %v56 = vpop.permute.xlu0 %55
    %v62 = vunpack.c.l.b16 %v30
    %v63 = vunpack.c.l.b16 %v31
    %v64 = vunpack.c.l.b16 %v32
    %v65 = vunpack.c.l.b16 %v33
    %v66 = vpack.c.b16 %v63, %v62
    %v67 = vpack.c.b16 %v65, %v64
    %v70 = vunpack.c.l.b16 %v28
    %v71 = vunpack.c.l.b16 %v29
    %v72 = vpack.c.b16 %v71, %v70
    %vm74 = vcmask 130048
    %v76 = vsel %vm74, %v66, 0
    %v79 = vsel %vm74, %v67, 0
    %81 = vmatprep.subr.bf16.mxu0 0
    %82 = vmatpush1.bf16.msra.mxu0 %v72
    %83 = vmatprep.subr.bf16.mxu0 0
    %84 = vmatpush1.bf16.msra.mxu0 0
    %85 = vmatprep.subr.bf16.mxu0 0
    %86 = vmatpush1.bf16.msra.mxu0 0
    %87 = vmatprep.subr.bf16.mxu0 0
    %88 = vmatpush1.bf16.msra.mxu0 0
    %89 = vmatprep.subr.bf16.mxu0 0
    %90 = vmatpush1.bf16.msra.mxu0 0
    %91 = vmatprep.subr.bf16.mxu0 0
    %92 = vmatpush1.bf16.msra.mxu0 0
    %93 = vmatprep.subr.bf16.mxu0 0
    %94 = vmatpush1.bf16.msra.mxu0 0
    %95 = vmatprep.subr.bf16.mxu0 0
    %96 = vmatpush1.bf16.msra.mxu0 0
    %97 = vmatprep.subr.bf16.mxu0 0
    %98 = vmatpush1.bf16.msra.mxu0 0
    %99 = vmatprep.subr.bf16.mxu0 0
    %100 = vmatpush1.bf16.msra.mxu0 0
    %101 = vmatprep.subr.bf16.mxu0 0
    %102 = vmatpush1.bf16.msra.mxu0 0
    %103 = vmatprep.subr.bf16.mxu0 0
    %104 = vmatpush1.bf16.msra.mxu0 0
    %105 = vmatprep.subr.bf16.mxu0 0
    %106 = vmatpush1.bf16.msra.mxu0 0
    %107 = vmatprep.subr.bf16.mxu0 0
    %108 = vmatpush1.bf16.msra.mxu0 0
    %109 = vmatprep.subr.bf16.mxu0 0
    %110 = vmatpush1.bf16.msra.mxu0 0
    %111 = vmatprep.subr.bf16.mxu0 0
    %112 = vmatpush1.bf16.msra.mxu0 0
    %113 = vmatprep.mubr.bf16.mxu0 0
    %114 = vmatmul.mubr.bf16.gmra.mrb[0].mxu0 %v76
    %v115 = vpop.f32.mrb[0].mxu0
    %v116 = vadd.f32 %v41, %v115
    %v117 = vpop.f32.mrb[0].mxu0
    %v118 = vpop.f32.mrb[0].mxu0
    %v119 = vadd.f32 %v46, %v118
    %v120 = vpop.f32.mrb[0].mxu0
    %121 = vmatprep.mubr.bf16.mxu0 0
    %122 = vmatmul.mubr.bf16.gmra.mrb[0].mxu0 %v79
    %v123 = vpop.f32.mrb[0].mxu0
    %v124 = vadd.f32 %v51, %v123
    %v125 = vpop.f32.mrb[0].mxu0
    %v126 = vpop.f32.mrb[0].mxu0
    %v127 = vadd.f32 %v56, %v126
    %v128 = vpop.f32.mrb[0].mxu0
    %129 = vdwg.mxu0
    %v130 = vmax.f32 %v116, 0.0
    %v131 = vmax.f32 %v119, 0.0
    %v132 = vmax.f32 %v124, 0.0
    %v133 = vmax.f32 %v127, 0.0
    %v134 = vld [vmem:[%s3] sm:$0xf]
    %v135 = vld [vmem:[%s3 + $0x4] sm:$0xf]
    %v136 = vld [vmem:[%s3 + $0x8] sm:$0xf]
    %v137 = vld [vmem:[%s3 + $0xc] sm:$0xf]
    %v138 = vld [vmem:[%s4] sm:$0xff]
    %v139 = vld [vmem:[%s4 + $0x8] sm:$0xff]
    %v140 = vld [vmem:[%s4 + $0x10] sm:$0xff]
    %v141 = vld [vmem:[%s4 + $0x18] sm:$0xff]
    %v142 = vpack.c.bf16 %v131, %v130
    %v143 = vpack.c.bf16 %v133, %v132
    %145 = vset.pattern.permute.xlu0 0
    %146 = vperm.xlu0 %145, %v138
    %v147 = vpop.permute.xlu0 %146
    %150 = vset.pattern.permute.xlu0 0
    %151 = vperm.xlu0 %150, %v139
    %v152 = vpop.permute.xlu0 %151
    %155 = vset.pattern.permute.xlu0 0
    %156 = vperm.xlu0 %155, %v140
    %v157 = vpop.permute.xlu0 %156
    %160 = vset.pattern.permute.xlu0 0
    %161 = vperm.xlu0 %160, %v141
    %v162 = vpop.permute.xlu0 %161
    %v168 = vunpack.c.l.b16 %v134
    %v169 = vunpack.c.l.b16 %v135
    %v170 = vunpack.c.l.b16 %v136
    %v171 = vunpack.c.l.b16 %v137
    %v172 = vpack.c.b16 %v169, %v168
    %v173 = vpack.c.b16 %v171, %v170
    %vm174 = vcmask 261120
    %v176 = vsel %vm174, %v172, 0
    %v179 = vsel %vm174, %v173, 0
    %181 = vmatprep.subr.bf16.mxu0 0
    %182 = vmatpush1.bf16.msra.mxu0 %v142
    %183 = vmatprep.subr.bf16.mxu0 0
    %184 = vmatpush1.bf16.msra.mxu0 %v143
    %185 = vmatprep.subr.bf16.mxu0 0
    %186 = vmatpush1.bf16.msra.mxu0 0
    %187 = vmatprep.subr.bf16.mxu0 0
    %188 = vmatpush1.bf16.msra.mxu0 0
    %189 = vmatprep.subr.bf16.mxu0 0
    %190 = vmatpush1.bf16.msra.mxu0 0
    %191 = vmatprep.subr.bf16.mxu0 0
    %192 = vmatpush1.bf16.msra.mxu0 0
    %193 = vmatprep.subr.bf16.mxu0 0
    %194 = vmatpush1.bf16.msra.mxu0 0
    %195 = vmatprep.subr.bf16.mxu0 0
    %196 = vmatpush1.bf16.msra.mxu0 0
    %197 = vmatprep.subr.bf16.mxu0 0
    %198 = vmatpush1.bf16.msra.mxu0 0
    %199 = vmatprep.subr.bf16.mxu0 0
    %200 = vmatpush1.bf16.msra.mxu0 0
    %201 = vmatprep.subr.bf16.mxu0 0
    %202 = vmatpush1.bf16.msra.mxu0 0
    %203 = vmatprep.subr.bf16.mxu0 0
    %204 = vmatpush1.bf16.msra.mxu0 0
    %205 = vmatprep.subr.bf16.mxu0 0
    %206 = vmatpush1.bf16.msra.mxu0 0
    %207 = vmatprep.subr.bf16.mxu0 0
    %208 = vmatpush1.bf16.msra.mxu0 0
    %209 = vmatprep.subr.bf16.mxu0 0
    %210 = vmatpush1.bf16.msra.mxu0 0
    %211 = vmatprep.subr.bf16.mxu0 0
    %212 = vmatpush1.bf16.msra.mxu0 0
    %213 = vmatprep.mubr.bf16.mxu0 0
    %214 = vmatmul.mubr.bf16.gmra.mrb[0].mxu0 %v176
    %v215 = vpop.f32.mrb[0].mxu0
    %v216 = vadd.f32 %v147, %v215
    %v217 = vpop.f32.mrb[0].mxu0
    %v218 = vpop.f32.mrb[0].mxu0
    %v219 = vadd.f32 %v152, %v218
    %v220 = vpop.f32.mrb[0].mxu0
    %221 = vmatprep.mubr.bf16.mxu0 0
    %222 = vmatmul.mubr.bf16.gmra.mrb[0].mxu0 %v179
    %v223 = vpop.f32.mrb[0].mxu0
    %v224 = vadd.f32 %v157, %v223
    %v225 = vpop.f32.mrb[0].mxu0
    %v226 = vpop.f32.mrb[0].mxu0
    %v227 = vadd.f32 %v162, %v226
    %v228 = vpop.f32.mrb[0].mxu0
    %229 = vdwg.mxu0
    %v230 = vmax.f32 %v216, 0.0
    %v231 = vmax.f32 %v219, 0.0
    %v232 = vmax.f32 %v224, 0.0
    %v233 = vmax.f32 %v227, 0.0
    %v234 = vld [vmem:[%s5] sm:$0xf]
    %v235 = vld [vmem:[%s6] sm:$0xff]
    %v236 = vpack.c.bf16 %v231, %v230
    %v237 = vpack.c.bf16 %v233, %v232
    %239 = vset.pattern.permute.xlu0 0
    %240 = vperm.xlu0 %239, %v235
    %v241 = vpop.permute.xlu0 %240
    %v244 = vsel %vm174, %v234, 0
    %246 = vmatprep.subr.bf16.mxu0 0
    %247 = vmatpush1.bf16.msra.mxu0 %v236
    %248 = vmatprep.subr.bf16.mxu0 0
    %249 = vmatpush1.bf16.msra.mxu0 %v237
    %250 = vmatprep.subr.bf16.mxu0 0
    %251 = vmatpush1.bf16.msra.mxu0 0
    %252 = vmatprep.subr.bf16.mxu0 0
    %253 = vmatpush1.bf16.msra.mxu0 0
    %254 = vmatprep.subr.bf16.mxu0 0
    %255 = vmatpush1.bf16.msra.mxu0 0
    %256 = vmatprep.subr.bf16.mxu0 0
    %257 = vmatpush1.bf16.msra.mxu0 0
    %258 = vmatprep.subr.bf16.mxu0 0
    %259 = vmatpush1.bf16.msra.mxu0 0
    %260 = vmatprep.subr.bf16.mxu0 0
    %261 = vmatpush1.bf16.msra.mxu0 0
    %262 = vmatprep.subr.bf16.mxu0 0
    %263 = vmatpush1.bf16.msra.mxu0 0
    %264 = vmatprep.subr.bf16.mxu0 0
    %265 = vmatpush1.bf16.msra.mxu0 0
    %266 = vmatprep.subr.bf16.mxu0 0
    %267 = vmatpush1.bf16.msra.mxu0 0
    %268 = vmatprep.subr.bf16.mxu0 0
    %269 = vmatpush1.bf16.msra.mxu0 0
    %270 = vmatprep.subr.bf16.mxu0 0
    %271 = vmatpush1.bf16.msra.mxu0 0
    %272 = vmatprep.subr.bf16.mxu0 0
    %273 = vmatpush1.bf16.msra.mxu0 0
    %274 = vmatprep.subr.bf16.mxu0 0
    %275 = vmatpush1.bf16.msra.mxu0 0
    %276 = vmatprep.subr.bf16.mxu0 0
    %277 = vmatpush1.bf16.msra.mxu0 0
    %278 = vmatprep.mubr.bf16.mxu0 0
    %279 = vmatmul.mubr.bf16.gmra.mrb[0].mxu0 %v244
    %v280 = vpop.f32.mrb[0].mxu0
    %v281 = vadd.f32 %v241, %v280
    %v282 = vpop.f32.mrb[0].mxu0
    %v283 = vpop.f32.mrb[0].mxu0
    %v284 = vpop.f32.mrb[0].mxu0
    %285 = vdwg.mxu0
    %v286 = vtanh.pop %v281
    %vm287 = vcmask 64512
    %288 = vst.msk [vmem:[#allocation2] sm:$0xff] %vm287, %v286
    // Predicated region
    $region30: #{tpu_custom_call.1} parent=1 // pred_check
      _
    $region31: #{tpu_custom_call.1} parent=1 // pred_check_branch
      %290 = sbr.rel (0) target = $region33
    $region32: #{tpu_custom_call.1} parent=1 // pred_region
      %s292 = ssub.s32 128, 128
      %293 = vsyncadd [#allocation3], %s292
      %s295 = sshll.u32 [#allocation2], 4
      %s296 = int_to_ptr.vmem [resolvable:$true] %s295
      %298 = dma.vmem_to_hbm [thread:$0]  %s296, 128, %s7, [#allocation3]
    $region33: #{tpu_custom_call.1} parent=1 // pred_fallthru
      _
    // Predicated region
    $region34: #{tpu_custom_call.1} parent=1 // pred_check
      _
    $region35: #{tpu_custom_call.1} parent=1 // pred_check_branch
      %300 = sbr.rel (0) target = $region37
    $region36: #{tpu_custom_call.1} parent=1 // pred_region
      %301 = dma.done [#allocation3], 128
    $region37: #{tpu_custom_call.1} parent=1 // pred_fallthru
      _
    %302 = vsyncpa [#allocation3], 1

</llo_original>
